<compile_context>
chip_gen: v5e
topology: v5e:2x2
jax: 0.10.0
libtpu: 0.0.40
codegen_flags: <defaults>
</compile_context>

<pallas_src>
import functools
import math

import jax
import jax.numpy as jnp
from jax import lax
from jax.experimental import pallas as pl
from jax.experimental.pallas import tpu as pltpu

EPS = 1e-12  # F.normalize eps


def _matmul_nt(a, b):
    # a @ b.T without materializing the transpose (contract last dims) -> MXU.
    return lax.dot_general(
        a, b, (((1,), (1,)), ((), ())), preferred_element_type=jnp.float32
    )


def _row_normalize(v):
    # v / max(||v||, eps) == v * rsqrt(max(||v||^2, eps^2)); one pass per array.
    ss = jnp.sum(v * v, axis=1, keepdims=True)
    return v * lax.rsqrt(jnp.maximum(ss, EPS * EPS))


def _hyp_kernel(x_ref, y_ref, p_ref, label_ref, out_ref, *, mm_dtype):
    x = x_ref[...]          # (B, D)
    y = y_ref[...]          # (B, D)
    p = p_ref[...]          # (C, D)
    label = label_ref[...]  # (B, C) multi-hot 0/1
    B, C = label.shape

    xn = _row_normalize(x)
    yn = _row_normalize(y)
    pn = _row_normalize(p)
    ln = _row_normalize(label)

    # bf16 operands for the data matmuls (f32 accumulate) at real sizes; the
    # label path stays f32 so L's exact zero pattern survives.
    xm = xn.astype(mm_dtype)
    ym = yn.astype(mm_dtype)
    pm = pn.astype(mm_dtype)

    cos = _matmul_nt(xm, pm)        # (B, C)
    cos_t = _matmul_nt(ym, pm)      # (B, C)
    x_sim = _matmul_nt(xm, xm)      # (B, B)
    y_sim = _matmul_nt(ym, ym)      # (B, B)
    xy_sim = _matmul_nt(xm, ym)     # (B, B)  (yx_sim never contributes -> dropped)
    l_mat = _matmul_nt(ln, ln)      # (B, B), f32

    # Multi-label row indicator and its pair mask (rank-1 outer product on MXU,
    # avoids a sublane->lane transpose of the indicator column).
    row_sum = jnp.sum(label, axis=1, keepdims=True)          # (B, 1)
    idxf = jnp.where(row_sum > 1.0, 1.0, 0.0)                # (B, 1) exact 0/1
    pairf = _matmul_nt(idxf, idxf)                           # (B, B) exact 0/1

    # ---- (B, C) domain: proxy terms + row variances --------------------------
    pos_x = label * (1.0 - cos)                               # masked pos
    pos_t = label * (1.0 - cos_t)                             # masked pos_t
    neg_b = (1.0 - label) * (jnp.maximum(cos, 0.0) + jnp.maximum(cos_t, 0.0))

    s1x = jnp.sum(pos_x, axis=1, keepdims=True)               # (B, 1)
    s1t = jnp.sum(pos_t, axis=1, keepdims=True)
    s2 = jnp.sum(pos_x * pos_x + pos_t * pos_t, axis=1, keepdims=True)
    n1 = jnp.sum(neg_b, axis=1, keepdims=True)
    # unbiased row variance over all C entries: (sum(z^2) - sum(z)^2 / C) / (C-1)
    inv_cm1 = 1.0 / max(C - 1, 1)
    var_row = (s2 - (s1x * s1x + s1t * s1t) * (1.0 / C)) * inv_cm1

    # ---- (B, B) domain: p2p / n2n pair terms ---------------------------------
    l_posf = jnp.where(l_mat > 0.0, 1.0, 0.0)
    # pairs of multi-label rows with no shared label (exact-zero check valid in f32)
    zerof = jnp.where(l_mat == 0.0, pairf, 0.0)
    p2p_e = (jnp.maximum(l_mat - x_sim, 0.0)
             + jnp.maximum(l_mat - y_sim, 0.0)
             + jnp.maximum(l_mat - xy_sim, 0.0))
    n2n_e = (jnp.maximum(x_sim, 0.0)
             + jnp.maximum(y_sim, 0.0)
             + jnp.maximum(xy_sim, 0.0))

    pe_row = jnp.sum(l_posf * p2p_e, axis=1, keepdims=True)   # (B, 1)
    cp_row = jnp.sum(l_posf, axis=1, keepdims=True)
    ne_row = jnp.sum(zerof * n2n_e, axis=1, keepdims=True)
    cz_row = jnp.sum(zerof, axis=1, keepdims=True)

    # ---- one combined cross-sublane reduce over every per-row partial --------
    packed = jnp.concatenate(
        [s1x + s1t,             # 0: pos numerator (x and y halves)
         n1,                    # 1: neg numerator (x and y halves)
         var_row,               # 2: variance rows (weight 1/B)
         row_sum,               # 3: -> P_num
         float(C) - row_sum,    # 4: -> N_num
         pe_row,                # 5: p2p numerator
         cp_row,                # 6: |L > 0|
         ne_row,                # 7: n2n numerator
         cz_row],               # 8: |zero-overlap multi-label pairs|
        axis=1)                                             # (B, 9)
    tot = jnp.sum(packed, axis=0, keepdims=True)            # (1, 9)

    # One vectorized EUP reciprocal covering every divisor column.
    inv = pl.reciprocal(jnp.maximum(tot, 1e-30), approx=True)   # (1, 9)

    n2n = jnp.where(tot[:, 8:9] > 0.0, tot[:, 7:8] * inv[:, 8:9], 0.0)
    loss = (tot[:, 0:1] * inv[:, 3:4]            # (pos_term + pos_term_t)
            + tot[:, 1:2] * inv[:, 4:5]          # (neg_term + neg_term_t)
            + tot[:, 2:3] * (1.0 / B)            # variance_loss
            + 0.05 * tot[:, 5:6] * inv[:, 6:7]   # 0.05 * p2p
            + 0.8 * n2n)                         # 0.8  * n2n
    out_ref[0, 0] = loss[0, 0]


def hyp_loss(x, y, proxies, label, *, bf16_matmul=None):
    x = jnp.asarray(x, jnp.float32)
    y = jnp.asarray(y, jnp.float32)
    proxies = jnp.asarray(proxies, jnp.float32)
    label = jnp.asarray(label, jnp.float32)
    B, D = x.shape
    C = proxies.shape[0]

    # bf16 matmul operands: 2-4x MXU win at real sizes, neutral at toy sizes
    # (per review) where it would only perturb numerics -> auto-gate on size.
    if bf16_matmul is None:
        bf16_matmul = max(B, C, D) >= 128
    mm_dtype = jnp.bfloat16 if bf16_matmul else jnp.float32

    # Monolithic single-block kernel: raise the scoped VMEM limit above the
    # 16/32 MiB defaults once the shape estimate outgrows them (v6e/v7x note).
    est = 4 * (4 * (2 * B + C) * D + 8 * B * C + 12 * B * B) + (1 << 20)
    vmem_limit = int(min(max(est, 32 * 1024 * 1024), 100 * 1024 * 1024))

    out = pl.pallas_call(
        functools.partial(_hyp_kernel, mm_dtype=mm_dtype),
        out_shape=jax.ShapeDtypeStruct((1, 1), jnp.float32),
        in_specs=[pl.BlockSpec(memory_space=pltpu.MemorySpace.VMEM)] * 4,
        out_specs=pl.BlockSpec(memory_space=pltpu.MemorySpace.SMEM),
        compiler_params=pltpu.CompilerParams(vmem_limit_bytes=vmem_limit),
    )(x, y, proxies, label)
    return out[0, 0]


if __name__ == "__main__":
    B, C, D = 8, 16, 32  # batch, num classes, output_dim

    key = jax.random.PRNGKey(0)
    kx, ky, kp = jax.random.split(key, 3)
    x = jax.random.normal(kx, (B, D), jnp.float32)
    y = jax.random.normal(ky, (B, D), jnp.float32)

    # proxies ~ kaiming_normal_(mode='fan_out') -> std = sqrt(2 / C), then tanh
    proxies = jnp.tanh(
        jax.random.normal(kp, (C, D), jnp.float32) * math.sqrt(2.0 / C)
    )

    # deterministic multi-hot labels; even rows carry 2 labels so both the
    # multi-label (n2n) branch and the L>0 (p2p) branch are exercised.
    label = jnp.zeros((B, C), jnp.float32)
    label = label.at[jnp.arange(B), jnp.arange(B) % C].set(1.0)
    even = jnp.arange(0, B, 2)
    label = label.at[even, (even + 5) % C].set(1.0)

    loss = hyp_loss(x, y, proxies, label)
    jax.block_until_ready(loss)
    print("KERNEL_OK")
</pallas_src>

<mosaic_0001>
module attributes {stable_mosaic.version = 11 : i64} {
  func.func @_hyp_kernel(%arg0: memref<8x32xf32, #tpu.memory_space<vmem>>, %arg1: memref<8x32xf32, #tpu.memory_space<vmem>>, %arg2: memref<16x32xf32, #tpu.memory_space<vmem>>, %arg3: memref<8x16xf32, #tpu.memory_space<vmem>>, %arg4: memref<1x1xf32, #tpu.memory_space<smem>>) attributes {dimension_semantics = [], scalar_prefetch = 0 : i64, scratch_operands = 0 : i64, tpu.core_type = #tpu.core_type<tc>} {
    %c0 = arith.constant 0 : index
    %c0_0 = arith.constant 0 : index
    %0 = vector.load %arg0[%c0, %c0_0] : memref<8x32xf32, #tpu.memory_space<vmem>>, vector<8x32xf32>
    %c0_1 = arith.constant 0 : index
    %c0_2 = arith.constant 0 : index
    %1 = vector.load %arg1[%c0_1, %c0_2] : memref<8x32xf32, #tpu.memory_space<vmem>>, vector<8x32xf32>
    %c0_3 = arith.constant 0 : index
    %c0_4 = arith.constant 0 : index
    %2 = vector.load %arg2[%c0_3, %c0_4] : memref<16x32xf32, #tpu.memory_space<vmem>>, vector<16x32xf32>
    %c0_5 = arith.constant 0 : index
    %c0_6 = arith.constant 0 : index
    %3 = vector.load %arg3[%c0_5, %c0_6] : memref<8x16xf32, #tpu.memory_space<vmem>>, vector<8x16xf32>
    %4 = arith.mulf %0, %0 : vector<8x32xf32>
    %cst = arith.constant dense<0.000000e+00> : vector<8xf32>
    %5 = vector.multi_reduction <add>, %4, %cst [1] : vector<8x32xf32> to vector<8xf32>
    %6 = vector.shape_cast %5 : vector<8xf32> to vector<8x1xf32>
    %cst_7 = arith.constant 1.000000e-24 : f32
    %7 = vector.broadcast %cst_7 : f32 to vector<8x1xf32>
    %8 = arith.maximumf %6, %7 : vector<8x1xf32>
    %9 = math.rsqrt %8 : vector<8x1xf32>
    %10 = vector.broadcast %9 : vector<8x1xf32> to vector<8x32xf32>
    %11 = arith.mulf %0, %10 : vector<8x32xf32>
    %12 = arith.mulf %1, %1 : vector<8x32xf32>
    %cst_8 = arith.constant dense<0.000000e+00> : vector<8xf32>
    %13 = vector.multi_reduction <add>, %12, %cst_8 [1] : vector<8x32xf32> to vector<8xf32>
    %14 = vector.shape_cast %13 : vector<8xf32> to vector<8x1xf32>
    %cst_9 = arith.constant 1.000000e-24 : f32
    %15 = vector.broadcast %cst_9 : f32 to vector<8x1xf32>
    %16 = arith.maximumf %14, %15 : vector<8x1xf32>
    %17 = math.rsqrt %16 : vector<8x1xf32>
    %18 = vector.broadcast %17 : vector<8x1xf32> to vector<8x32xf32>
    %19 = arith.mulf %1, %18 : vector<8x32xf32>
    %20 = arith.mulf %2, %2 : vector<16x32xf32>
    %cst_10 = arith.constant dense<0.000000e+00> : vector<16xf32>
    %21 = vector.multi_reduction <add>, %20, %cst_10 [1] : vector<16x32xf32> to vector<16xf32>
    %22 = vector.shape_cast %21 : vector<16xf32> to vector<16x1xf32>
    %cst_11 = arith.constant 1.000000e-24 : f32
    %23 = vector.broadcast %cst_11 : f32 to vector<16x1xf32>
    %24 = arith.maximumf %22, %23 : vector<16x1xf32>
    %25 = math.rsqrt %24 : vector<16x1xf32>
    %26 = vector.broadcast %25 : vector<16x1xf32> to vector<16x32xf32>
    %27 = arith.mulf %2, %26 : vector<16x32xf32>
    %28 = arith.mulf %3, %3 : vector<8x16xf32>
    %cst_12 = arith.constant dense<0.000000e+00> : vector<8xf32>
    %29 = vector.multi_reduction <add>, %28, %cst_12 [1] : vector<8x16xf32> to vector<8xf32>
    %30 = vector.shape_cast %29 : vector<8xf32> to vector<8x1xf32>
    %cst_13 = arith.constant 1.000000e-24 : f32
    %31 = vector.broadcast %cst_13 : f32 to vector<8x1xf32>
    %32 = arith.maximumf %30, %31 : vector<8x1xf32>
    %33 = math.rsqrt %32 : vector<8x1xf32>
    %34 = vector.broadcast %33 : vector<8x1xf32> to vector<8x16xf32>
    %35 = arith.mulf %3, %34 : vector<8x16xf32>
    %cst_14 = arith.constant dense<0.000000e+00> : vector<8x16xf32>
    %36 = tpu.matmul %11, %27, %cst_14 {dimension_numbers = #tpu.dot_dimension_numbers<[1], [1], [0], [0], [0, 0, 1, 0], [], []>} : vector<8x32xf32>, vector<16x32xf32>, vector<8x16xf32> -> vector<8x16xf32>
    %cst_15 = arith.constant dense<0.000000e+00> : vector<8x16xf32>
    %37 = tpu.matmul %19, %27, %cst_15 {dimension_numbers = #tpu.dot_dimension_numbers<[1], [1], [0], [0], [0, 0, 1, 0], [], []>} : vector<8x32xf32>, vector<16x32xf32>, vector<8x16xf32> -> vector<8x16xf32>
    %cst_16 = arith.constant dense<0.000000e+00> : vector<8x8xf32>
    %38 = tpu.matmul %11, %11, %cst_16 {dimension_numbers = #tpu.dot_dimension_numbers<[1], [1], [0], [0], [0, 0, 1, 0], [], []>} : vector<8x32xf32>, vector<8x32xf32>, vector<8x8xf32> -> vector<8x8xf32>
    %cst_17 = arith.constant dense<0.000000e+00> : vector<8x8xf32>
    %39 = tpu.matmul %19, %19, %cst_17 {dimension_numbers = #tpu.dot_dimension_numbers<[1], [1], [0], [0], [0, 0, 1, 0], [], []>} : vector<8x32xf32>, vector<8x32xf32>, vector<8x8xf32> -> vector<8x8xf32>
    %cst_18 = arith.constant dense<0.000000e+00> : vector<8x8xf32>
    %40 = tpu.matmul %11, %19, %cst_18 {dimension_numbers = #tpu.dot_dimension_numbers<[1], [1], [0], [0], [0, 0, 1, 0], [], []>} : vector<8x32xf32>, vector<8x32xf32>, vector<8x8xf32> -> vector<8x8xf32>
    %cst_19 = arith.constant dense<0.000000e+00> : vector<8x8xf32>
    %41 = tpu.matmul %35, %35, %cst_19 {dimension_numbers = #tpu.dot_dimension_numbers<[1], [1], [0], [0], [0, 0, 1, 0], [], []>} : vector<8x16xf32>, vector<8x16xf32>, vector<8x8xf32> -> vector<8x8xf32>
    %cst_20 = arith.constant dense<0.000000e+00> : vector<8xf32>
    %42 = vector.multi_reduction <add>, %3, %cst_20 [1] : vector<8x16xf32> to vector<8xf32>
    %43 = vector.shape_cast %42 : vector<8xf32> to vector<8x1xf32>
    %cst_21 = arith.constant 1.000000e+00 : f32
    %44 = vector.broadcast %cst_21 : f32 to vector<8x1xf32>
    %45 = arith.cmpf ogt, %43, %44 : vector<8x1xf32>
    %cst_22 = arith.constant 1.000000e+00 : f32
    %cst_23 = arith.constant 0.000000e+00 : f32
    %46 = vector.broadcast %cst_22 : f32 to vector<8x1xf32>
    %47 = vector.broadcast %cst_23 : f32 to vector<8x1xf32>
    %48 = arith.select %45, %46, %47 : vector<8x1xi1>, vector<8x1xf32>
    %cst_24 = arith.constant dense<0.000000e+00> : vector<8x8xf32>
    %49 = tpu.matmul %48, %48, %cst_24 {dimension_numbers = #tpu.dot_dimension_numbers<[1], [1], [0], [0], [0, 0, 1, 0], [], []>} : vector<8x1xf32>, vector<8x1xf32>, vector<8x8xf32> -> vector<8x8xf32>
    %cst_25 = arith.constant 1.000000e+00 : f32
    %50 = vector.broadcast %cst_25 : f32 to vector<8x16xf32>
    %51 = arith.subf %50, %36 : vector<8x16xf32>
    %52 = arith.mulf %3, %51 : vector<8x16xf32>
    %cst_26 = arith.constant 1.000000e+00 : f32
    %53 = vector.broadcast %cst_26 : f32 to vector<8x16xf32>
    %54 = arith.subf %53, %37 : vector<8x16xf32>
    %55 = arith.mulf %3, %54 : vector<8x16xf32>
    %cst_27 = arith.constant 1.000000e+00 : f32
    %56 = vector.broadcast %cst_27 : f32 to vector<8x16xf32>
    %57 = arith.subf %56, %3 : vector<8x16xf32>
    %cst_28 = arith.constant 0.000000e+00 : f32
    %58 = vector.broadcast %cst_28 : f32 to vector<8x16xf32>
    %59 = arith.maximumf %36, %58 : vector<8x16xf32>
    %cst_29 = arith.constant 0.000000e+00 : f32
    %60 = vector.broadcast %cst_29 : f32 to vector<8x16xf32>
    %61 = arith.maximumf %37, %60 : vector<8x16xf32>
    %62 = arith.addf %59, %61 : vector<8x16xf32>
    %63 = arith.mulf %57, %62 : vector<8x16xf32>
    %cst_30 = arith.constant dense<0.000000e+00> : vector<8xf32>
    %64 = vector.multi_reduction <add>, %52, %cst_30 [1] : vector<8x16xf32> to vector<8xf32>
    %65 = vector.shape_cast %64 : vector<8xf32> to vector<8x1xf32>
    %cst_31 = arith.constant dense<0.000000e+00> : vector<8xf32>
    %66 = vector.multi_reduction <add>, %55, %cst_31 [1] : vector<8x16xf32> to vector<8xf32>
    %67 = vector.shape_cast %66 : vector<8xf32> to vector<8x1xf32>
    %68 = arith.mulf %52, %52 : vector<8x16xf32>
    %69 = arith.mulf %55, %55 : vector<8x16xf32>
    %70 = arith.addf %68, %69 : vector<8x16xf32>
    %cst_32 = arith.constant dense<0.000000e+00> : vector<8xf32>
    %71 = vector.multi_reduction <add>, %70, %cst_32 [1] : vector<8x16xf32> to vector<8xf32>
    %72 = vector.shape_cast %71 : vector<8xf32> to vector<8x1xf32>
    %cst_33 = arith.constant dense<0.000000e+00> : vector<8xf32>
    %73 = vector.multi_reduction <add>, %63, %cst_33 [1] : vector<8x16xf32> to vector<8xf32>
    %74 = vector.shape_cast %73 : vector<8xf32> to vector<8x1xf32>
    %75 = arith.mulf %65, %65 : vector<8x1xf32>
    %76 = arith.mulf %67, %67 : vector<8x1xf32>
    %77 = arith.addf %75, %76 : vector<8x1xf32>
    %cst_34 = arith.constant 6.250000e-02 : f32
    %78 = vector.broadcast %cst_34 : f32 to vector<8x1xf32>
    %79 = arith.mulf %77, %78 : vector<8x1xf32>
    %80 = arith.subf %72, %79 : vector<8x1xf32>
    %cst_35 = arith.constant 0.0666666701 : f32
    %81 = vector.broadcast %cst_35 : f32 to vector<8x1xf32>
    %82 = arith.mulf %80, %81 : vector<8x1xf32>
    %cst_36 = arith.constant 0.000000e+00 : f32
    %83 = vector.broadcast %cst_36 : f32 to vector<8x8xf32>
    %84 = arith.cmpf ogt, %41, %83 : vector<8x8xf32>
    %cst_37 = arith.constant 1.000000e+00 : f32
    %cst_38 = arith.constant 0.000000e+00 : f32
    %85 = vector.broadcast %cst_37 : f32 to vector<8x8xf32>
    %86 = vector.broadcast %cst_38 : f32 to vector<8x8xf32>
    %87 = arith.select %84, %85, %86 : vector<8x8xi1>, vector<8x8xf32>
    %cst_39 = arith.constant 0.000000e+00 : f32
    %88 = vector.broadcast %cst_39 : f32 to vector<8x8xf32>
    %89 = arith.cmpf oeq, %41, %88 : vector<8x8xf32>
    %cst_40 = arith.constant 0.000000e+00 : f32
    %90 = vector.broadcast %cst_40 : f32 to vector<8x8xf32>
    %91 = arith.select %89, %49, %90 : vector<8x8xi1>, vector<8x8xf32>
    %92 = arith.subf %41, %38 : vector<8x8xf32>
    %cst_41 = arith.constant 0.000000e+00 : f32
    %93 = vector.broadcast %cst_41 : f32 to vector<8x8xf32>
    %94 = arith.maximumf %92, %93 : vector<8x8xf32>
    %95 = arith.subf %41, %39 : vector<8x8xf32>
    %cst_42 = arith.constant 0.000000e+00 : f32
    %96 = vector.broadcast %cst_42 : f32 to vector<8x8xf32>
    %97 = arith.maximumf %95, %96 : vector<8x8xf32>
    %98 = arith.addf %94, %97 : vector<8x8xf32>
    %99 = arith.subf %41, %40 : vector<8x8xf32>
    %cst_43 = arith.constant 0.000000e+00 : f32
    %100 = vector.broadcast %cst_43 : f32 to vector<8x8xf32>
    %101 = arith.maximumf %99, %100 : vector<8x8xf32>
    %102 = arith.addf %98, %101 : vector<8x8xf32>
    %cst_44 = arith.constant 0.000000e+00 : f32
    %103 = vector.broadcast %cst_44 : f32 to vector<8x8xf32>
    %104 = arith.maximumf %38, %103 : vector<8x8xf32>
    %cst_45 = arith.constant 0.000000e+00 : f32
    %105 = vector.broadcast %cst_45 : f32 to vector<8x8xf32>
    %106 = arith.maximumf %39, %105 : vector<8x8xf32>
    %107 = arith.addf %104, %106 : vector<8x8xf32>
    %cst_46 = arith.constant 0.000000e+00 : f32
    %108 = vector.broadcast %cst_46 : f32 to vector<8x8xf32>
    %109 = arith.maximumf %40, %108 : vector<8x8xf32>
    %110 = arith.addf %107, %109 : vector<8x8xf32>
    %111 = arith.mulf %87, %102 : vector<8x8xf32>
    %cst_47 = arith.constant dense<0.000000e+00> : vector<8xf32>
    %112 = vector.multi_reduction <add>, %111, %cst_47 [1] : vector<8x8xf32> to vector<8xf32>
    %113 = vector.shape_cast %112 : vector<8xf32> to vector<8x1xf32>
    %cst_48 = arith.constant dense<0.000000e+00> : vector<8xf32>
    %114 = vector.multi_reduction <add>, %87, %cst_48 [1] : vector<8x8xf32> to vector<8xf32>
    %115 = vector.shape_cast %114 : vector<8xf32> to vector<8x1xf32>
    %116 = arith.mulf %91, %110 : vector<8x8xf32>
    %cst_49 = arith.constant dense<0.000000e+00> : vector<8xf32>
    %117 = vector.multi_reduction <add>, %116, %cst_49 [1] : vector<8x8xf32> to vector<8xf32>
    %118 = vector.shape_cast %117 : vector<8xf32> to vector<8x1xf32>
    %cst_50 = arith.constant dense<0.000000e+00> : vector<8xf32>
    %119 = vector.multi_reduction <add>, %91, %cst_50 [1] : vector<8x8xf32> to vector<8xf32>
    %120 = vector.shape_cast %119 : vector<8xf32> to vector<8x1xf32>
    %121 = arith.addf %65, %67 : vector<8x1xf32>
    %cst_51 = arith.constant 1.600000e+01 : f32
    %122 = vector.broadcast %cst_51 : f32 to vector<8x1xf32>
    %123 = arith.subf %122, %43 : vector<8x1xf32>
    %124 = tpu.concatenate %121, %74, %82, %43, %123, %113, %115, %118, %120 in 1 : vector<8x1xf32>, vector<8x1xf32>, vector<8x1xf32>, vector<8x1xf32>, vector<8x1xf32>, vector<8x1xf32>, vector<8x1xf32>, vector<8x1xf32>, vector<8x1xf32> -> vector<8x9xf32>
    %cst_52 = arith.constant dense<0.000000e+00> : vector<9xf32>
    %125 = vector.multi_reduction <add>, %124, %cst_52 [0] : vector<8x9xf32> to vector<9xf32>
    %126 = vector.shape_cast %125 : vector<9xf32> to vector<1x9xf32>
    %cst_53 = arith.constant 1.000000e-30 : f32
    %127 = vector.broadcast %cst_53 : f32 to vector<1x9xf32>
    %128 = arith.maximumf %126, %127 : vector<1x9xf32>
    %129 = tpu.reciprocal %128 {approx = true} : vector<1x9xf32> -> vector<1x9xf32>
    %130 = vector.extract_strided_slice %126 {offsets = [0, 8], sizes = [1, 1], strides = [1, 1]} : vector<1x9xf32> to vector<1x1xf32>
    %cst_54 = arith.constant 0.000000e+00 : f32
    %131 = vector.broadcast %cst_54 : f32 to vector<1x1xf32>
    %132 = arith.cmpf ogt, %130, %131 : vector<1x1xf32>
    %133 = vector.extract_strided_slice %126 {offsets = [0, 7], sizes = [1, 1], strides = [1, 1]} : vector<1x9xf32> to vector<1x1xf32>
    %134 = vector.extract_strided_slice %129 {offsets = [0, 8], sizes = [1, 1], strides = [1, 1]} : vector<1x9xf32> to vector<1x1xf32>
    %135 = arith.mulf %133, %134 : vector<1x1xf32>
    %cst_55 = arith.constant 0.000000e+00 : f32
    %136 = vector.broadcast %cst_55 : f32 to vector<1x1xf32>
    %137 = arith.select %132, %135, %136 : vector<1x1xi1>, vector<1x1xf32>
    %138 = vector.extract_strided_slice %126 {offsets = [0, 0], sizes = [1, 1], strides = [1, 1]} : vector<1x9xf32> to vector<1x1xf32>
    %139 = vector.extract_strided_slice %129 {offsets = [0, 3], sizes = [1, 1], strides = [1, 1]} : vector<1x9xf32> to vector<1x1xf32>
    %140 = arith.mulf %138, %139 : vector<1x1xf32>
    %141 = vector.extract_strided_slice %126 {offsets = [0, 1], sizes = [1, 1], strides = [1, 1]} : vector<1x9xf32> to vector<1x1xf32>
    %142 = vector.extract_strided_slice %129 {offsets = [0, 4], sizes = [1, 1], strides = [1, 1]} : vector<1x9xf32> to vector<1x1xf32>
    %143 = arith.mulf %141, %142 : vector<1x1xf32>
    %144 = arith.addf %140, %143 : vector<1x1xf32>
    %145 = vector.extract_strided_slice %126 {offsets = [0, 2], sizes = [1, 1], strides = [1, 1]} : vector<1x9xf32> to vector<1x1xf32>
    %cst_56 = arith.constant 1.250000e-01 : f32
    %146 = vector.broadcast %cst_56 : f32 to vector<1x1xf32>
    %147 = arith.mulf %145, %146 : vector<1x1xf32>
    %148 = arith.addf %144, %147 : vector<1x1xf32>
    %149 = vector.extract_strided_slice %126 {offsets = [0, 5], sizes = [1, 1], strides = [1, 1]} : vector<1x9xf32> to vector<1x1xf32>
    %cst_57 = arith.constant 5.000000e-02 : f32
    %150 = vector.broadcast %cst_57 : f32 to vector<1x1xf32>
    %151 = arith.mulf %150, %149 : vector<1x1xf32>
    %152 = vector.extract_strided_slice %129 {offsets = [0, 6], sizes = [1, 1], strides = [1, 1]} : vector<1x9xf32> to vector<1x1xf32>
    %153 = arith.mulf %151, %152 : vector<1x1xf32>
    %154 = arith.addf %148, %153 : vector<1x1xf32>
    %cst_58 = arith.constant 8.000000e-01 : f32
    %155 = vector.broadcast %cst_58 : f32 to vector<1x1xf32>
    %156 = arith.mulf %155, %137 : vector<1x1xf32>
    %157 = arith.addf %154, %156 : vector<1x1xf32>
    %158 = vector.extract %157[0, 0] : f32 from vector<1x1xf32>
    %c0_59 = arith.constant 0 : index
    %c0_60 = arith.constant 0 : index
    %159 = memref.load %arg4[%c0_59, %c0_60] : memref<1x1xf32, #tpu.memory_space<smem>>
    memref.store %158, %arg4[%c0_59, %c0_60] : memref<1x1xf32, #tpu.memory_space<smem>>
    return
  }
}

</mosaic_0001>

<llo_original>
// kernel: tpu_custom_call.1
$region0: #{tpu_custom_call.1}
  #allocation0 [shape = 'u32[]', space=smem, size = 0x4, offset = 0x4, fixed_abs, tag = 'smem constant byte address 0x4 - core index']
  #allocation1 [shape = 'u32[72,128]{1,0:T(1,128)}', space=vmem, size = 0x9000, scoped, tag = 'internal scratch']
  %s0 = inlined_call_operand.hbm [shape: f32[8,32], index: 0, kind: input, shape index: {}]
  %s1 = inlined_call_operand.hbm [shape: f32[8,32], index: 1, kind: input, shape index: {}]
  %s2 = inlined_call_operand.hbm [shape: f32[16,32], index: 2, kind: input, shape index: {}]
  %s3 = inlined_call_operand.hbm [shape: f32[8,16], index: 3, kind: input, shape index: {}]
  %s4 = inlined_call_operand.hbm [shape: f32[1,1], index: 4, kind: output, shape index: {}]
  %s5 = sld [smem:[#allocation0]]
  $region42: #{tpu_custom_call.1} parent=0
    _
  %s7 = ssub.s32 1, %s5
  %s8 = scalar_select 0, %s7, %s5
  $region1: #{tpu_custom_call.1} parent=0
    #allocation2 [shape = 'u8[4096]{0}', space=vmem, size = 0x1000, scoped, tag = 'input window, operand 0, single buffered']
    #allocation3 [shape = 's32[1]{0}', space=sflag, size = 0x4, scoped, tag = 'scoped memory for tpu_custom_call.1']
    #allocation4 [shape = 's32[1]{0}', space=sflag, size = 0x4, scoped, tag = 'scoped memory for tpu_custom_call.1']
    #allocation5 [shape = 'u8[4096]{0}', space=vmem, size = 0x1000, scoped, tag = 'input window, operand 1, single buffered']
    #allocation6 [shape = 's32[1]{0}', space=sflag, size = 0x4, scoped, tag = 'scoped memory for tpu_custom_call.1']
    #allocation7 [shape = 'u8[8192]{0}', space=vmem, size = 0x2000, scoped, tag = 'input window, operand 2, single buffered']
    #allocation8 [shape = 'u8[4096]{0}', space=vmem, size = 0x1000, scoped, tag = 'input window, operand 3, single buffered']
    #allocation9 [shape = 's32[1]{0}', space=sflag, size = 0x4, scoped, tag = 'scoped memory for tpu_custom_call.1']
    #allocation10 [shape = 'u8[512]{0}', space=smem, size = 0x200, scoped, tag = 'output window, operand 0, single buffered']
    %9 = vsyncpa [#allocation3], 0
    %10 = vsyncpa [#allocation6], 0
    %11 = vsyncpa [#allocation9], 0
    %12 = vsyncpa [#allocation4], 0
    // Predicated region
    $region2: #{tpu_custom_call.1} parent=1 // pred_check
      _
    $region3: #{tpu_custom_call.1} parent=1 // pred_check_branch
      %14 = sbr.rel (0) target = $region5
    $region4: #{tpu_custom_call.1} parent=1 // pred_region
      %16 = vsyncadd [#allocation3], 0
      %s18 = sshll.u32 %s0, 4
      %s19 = int_to_ptr.hbm [resolvable:$true] %s18
      %s20 = sshll.u32 [#allocation2], 4
      %s21 = int_to_ptr.vmem [resolvable:$true] %s20
      %23 = dma.hbm_to_vmem [thread:$0]  %s19, 128, %s21, [#allocation3]
    $region5: #{tpu_custom_call.1} parent=1 // pred_fallthru
      _
    // Predicated region
    $region6: #{tpu_custom_call.1} parent=1 // pred_check
      _
    $region7: #{tpu_custom_call.1} parent=1 // pred_check_branch
      %25 = sbr.rel (0) target = $region9
    $region8: #{tpu_custom_call.1} parent=1 // pred_region
      %27 = vsyncadd [#allocation6], 0
      %s29 = sshll.u32 %s1, 4
      %s30 = int_to_ptr.hbm [resolvable:$true] %s29
      %s31 = sshll.u32 [#allocation5], 4
      %s32 = int_to_ptr.vmem [resolvable:$true] %s31
      %34 = dma.hbm_to_vmem [thread:$0]  %s30, 128, %s32, [#allocation6]
    $region9: #{tpu_custom_call.1} parent=1 // pred_fallthru
      _
    // Predicated region
    $region10: #{tpu_custom_call.1} parent=1 // pred_check
      _
    $region11: #{tpu_custom_call.1} parent=1 // pred_check_branch
      %36 = sbr.rel (0) target = $region13
    $region12: #{tpu_custom_call.1} parent=1 // pred_region
      %38 = vsyncadd [#allocation6], 0
      %s39 = sshll.u32 %s2, 4
      %s40 = int_to_ptr.hbm [resolvable:$true] %s39
      %s41 = sshll.u32 [#allocation7], 4
      %s42 = int_to_ptr.vmem [resolvable:$true] %s41
      %47 = dma.hbm_to_vmem [thread:$0]  %s40, 256, %s42, [#allocation6], 128, 128, 8
    $region13: #{tpu_custom_call.1} parent=1 // pred_fallthru
      _
    // Predicated region
    $region14: #{tpu_custom_call.1} parent=1 // pred_check
      _
    $region15: #{tpu_custom_call.1} parent=1 // pred_check_branch
      %49 = sbr.rel (0) target = $region17
    $region16: #{tpu_custom_call.1} parent=1 // pred_region
      %51 = vsyncadd [#allocation9], 0
      %s53 = sshll.u32 %s3, 4
      %s54 = int_to_ptr.hbm [resolvable:$true] %s53
      %s55 = sshll.u32 [#allocation8], 4
      %s56 = int_to_ptr.vmem [resolvable:$true] %s55
      %58 = dma.hbm_to_vmem [thread:$0]  %s54, 128, %s56, [#allocation9]
    $region17: #{tpu_custom_call.1} parent=1 // pred_fallthru
      _
    // Predicated region
    $region18: #{tpu_custom_call.1} parent=1 // pred_check
      _
    $region19: #{tpu_custom_call.1} parent=1 // pred_check_branch
      %60 = sbr.rel (0) target = $region21
    $region20: #{tpu_custom_call.1} parent=1 // pred_region
      %62 = dma.done [#allocation3], 128
    $region21: #{tpu_custom_call.1} parent=1 // pred_fallthru
      _
    // Predicated region
    $region22: #{tpu_custom_call.1} parent=1 // pred_check
      _
    $region23: #{tpu_custom_call.1} parent=1 // pred_check_branch
      %64 = sbr.rel (0) target = $region25
    $region24: #{tpu_custom_call.1} parent=1 // pred_region
      %66 = dma.done [#allocation6], 128
    $region25: #{tpu_custom_call.1} parent=1 // pred_fallthru
      _
    // Predicated region
    $region26: #{tpu_custom_call.1} parent=1 // pred_check
      _
    $region27: #{tpu_custom_call.1} parent=1 // pred_check_branch
      %68 = sbr.rel (0) target = $region29
    $region28: #{tpu_custom_call.1} parent=1 // pred_region
      %70 = dma.done [#allocation6], 256
    $region29: #{tpu_custom_call.1} parent=1 // pred_fallthru
      _
    // Predicated region
    $region30: #{tpu_custom_call.1} parent=1 // pred_check
      _
    $region31: #{tpu_custom_call.1} parent=1 // pred_check_branch
      %72 = sbr.rel (0) target = $region33
    $region32: #{tpu_custom_call.1} parent=1 // pred_region
      %74 = dma.done [#allocation9], 128
    $region33: #{tpu_custom_call.1} parent=1 // pred_fallthru
      _
    %v75 = vld [vmem:[#allocation2] sm:$0xff]
    %v76 = vld [vmem:[#allocation5] sm:$0xff]
    %v77 = vld [vmem:[#allocation7] sm:$0xff]
    %v78 = vld [vmem:[#allocation7 + $0x8] sm:$0xff]
    %v79 = vld [vmem:[#allocation8] sm:$0xff]
    %v80 = vmul.f32 %v75, %v75
    %vm81 = vcmask 261120
    %v82 = vsel %vm81, %v80, 0.0
    %83 = vadd.xlane.f32.xlu0 %v82
    %v84 = vpop.xlane.xlu0 %83
    %v85 = vmax.f32 %v84, 1e-24
    %v86 = vrsqrt.pop %v85
    %v87 = vmul.f32 %v86, %v85
    %v88 = vmul.f32 %v87, %v86
    %v89 = vmul.f32 0.5, %v88
    %v90 = vsub.f32 1.5, %v89
    %v91 = vmul.f32 %v86, %v90
    %vm92 = vweird.f32 %v85
    %vm93 = vweird.f32 %v86
    %vm94 = vmor %vm92, %vm93
    %v95 = vsel %vm94, %v86, %v91
    %v96 = vmul.f32 %v75, %v95
    %v97 = vmul.f32 %v76, %v76
    %v98 = vsel %vm81, %v97, 0.0
    %99 = vadd.xlane.f32.xlu0 %v98
    %v100 = vpop.xlane.xlu0 %99
    %v101 = vmax.f32 %v100, 1e-24
    %v102 = vrsqrt.pop %v101
    %v103 = vmul.f32 %v102, %v101
    %v104 = vmul.f32 %v103, %v102
    %v105 = vmul.f32 0.5, %v104
    %v106 = vsub.f32 1.5, %v105
    %v107 = vmul.f32 %v102, %v106
    %vm108 = vweird.f32 %v101
    %vm109 = vweird.f32 %v102
    %vm110 = vmor %vm108, %vm109
    %v111 = vsel %vm110, %v102, %v107
    %v112 = vmul.f32 %v76, %v111
    %v113 = vmul.f32 %v77, %v77
    %v114 = vmul.f32 %v78, %v78
    %v115 = vsel %vm81, %v113, 0.0
    %116 = vadd.xlane.f32.xlu0 %v115
    %v117 = vpop.xlane.xlu0 %116
    %v118 = vsel %vm81, %v114, 0.0
    %119 = vadd.xlane.f32.xlu0 %v118
    %v120 = vpop.xlane.xlu0 %119
    %v121 = vmax.f32 %v117, 1e-24
    %v122 = vmax.f32 %v120, 1e-24
    %v123 = vrsqrt.pop %v121
    %v124 = vmul.f32 %v123, %v121
    %v125 = vmul.f32 %v124, %v123
    %v126 = vmul.f32 0.5, %v125
    %v127 = vsub.f32 1.5, %v126
    %v128 = vmul.f32 %v123, %v127
    %vm129 = vweird.f32 %v121
    %vm130 = vweird.f32 %v123
    %vm131 = vmor %vm129, %vm130
    %v132 = vsel %vm131, %v123, %v128
    %v133 = vrsqrt.pop %v122
    %v134 = vmul.f32 %v133, %v122
    %v135 = vmul.f32 %v134, %v133
    %v136 = vmul.f32 0.5, %v135
    %v137 = vsub.f32 1.5, %v136
    %v138 = vmul.f32 %v133, %v137
    %vm139 = vweird.f32 %v122
    %vm140 = vweird.f32 %v133
    %vm141 = vmor %vm139, %vm140
    %v142 = vsel %vm141, %v133, %v138
    %v143 = vmul.f32 %v77, %v132
    %v144 = vmul.f32 %v78, %v142
    %v145 = vmul.f32 %v79, %v79
    %vm146 = vcmask 130048
    %v147 = vsel %vm146, %v145, 0.0
    %148 = vadd.xlane.f32.xlu0 %v147
    %v149 = vpop.xlane.xlu0 %148
    %v150 = vmax.f32 %v149, 1e-24
    %v151 = vrsqrt.pop %v150
    %v152 = vmul.f32 %v151, %v150
    %v153 = vmul.f32 %v152, %v151
    %v154 = vmul.f32 0.5, %v153
    %v155 = vsub.f32 1.5, %v154
    %v156 = vmul.f32 %v151, %v155
    %vm157 = vweird.f32 %v150
    %vm158 = vweird.f32 %v151
    %vm159 = vmor %vm157, %vm158
    %v160 = vsel %vm159, %v151, %v156
    %v161 = vmul.f32 %v79, %v160
    %v163 = vsel %vm81, %v96, 0
    %v166 = vsel %vm81, %v143, 0
    %v169 = vsel %vm81, %v144, 0
    %171 = vmatpush.xpose.msra.mxu0 0.0
    %172 = vmatpush.xpose.msra.mxu0 0.0
    %173 = vmatpush.xpose.msra.mxu0 0.0
    %174 = vmatpush.xpose.msra.mxu0 0.0
    %175 = vmatpush.xpose.msra.mxu0 0.0
    %176 = vmatpush.xpose.msra.mxu0 0.0
    %177 = vmatpush.xpose.msra.mxu0 0.0
    %178 = vmatpush.xpose.msra.mxu0 0.0
    %179 = vmatpush.xpose.msra.mxu0 0.0
    %180 = vmatpush.xpose.msra.mxu0 0.0
    %181 = vmatpush.xpose.msra.mxu0 0.0
    %182 = vmatpush.xpose.msra.mxu0 0.0
    %183 = vmatpush.xpose.msra.mxu0 0.0
    %184 = vmatpush.xpose.msra.mxu0 0.0
    %185 = vmatpush.xpose.msra.mxu0 %v169
    %186 = vmatpush.xpose.msra.mxu0 %v166
    %187 = vmatmul.f32.gmra.mxu0 %v163
    %v188 = vpop.f32.mrf.mxu0
    %v189 = vadd.f32 0.0, %v188
    %190 = vdwg.mxu0
    %v192 = vsel %vm81, %v112, 0
    %194 = vmatpush.xpose.msra.mxu0 0.0
    %195 = vmatpush.xpose.msra.mxu0 0.0
    %196 = vmatpush.xpose.msra.mxu0 0.0
    %197 = vmatpush.xpose.msra.mxu0 0.0
    %198 = vmatpush.xpose.msra.mxu0 0.0
    %199 = vmatpush.xpose.msra.mxu0 0.0
    %200 = vmatpush.xpose.msra.mxu0 0.0
    %201 = vmatpush.xpose.msra.mxu0 0.0
    %202 = vmatpush.xpose.msra.mxu0 0.0
    %203 = vmatpush.xpose.msra.mxu0 0.0
    %204 = vmatpush.xpose.msra.mxu0 0.0
    %205 = vmatpush.xpose.msra.mxu0 0.0
    %206 = vmatpush.xpose.msra.mxu0 0.0
    %207 = vmatpush.xpose.msra.mxu0 0.0
    %208 = vmatpush.xpose.msra.mxu0 %v169
    %209 = vmatpush.xpose.msra.mxu0 %v166
    %210 = vmatmul.f32.gmra.mxu0 %v192
    %v211 = vpop.f32.mrf.mxu0
    %v212 = vadd.f32 0.0, %v211
    %213 = vdwg.mxu0
    %214 = vmatpush.xpose.msra.mxu0 0.0
    %215 = vmatpush.xpose.msra.mxu0 0.0
    %216 = vmatpush.xpose.msra.mxu0 0.0
    %217 = vmatpush.xpose.msra.mxu0 0.0
    %218 = vmatpush.xpose.msra.mxu0 0.0
    %219 = vmatpush.xpose.msra.mxu0 0.0
    %220 = vmatpush.xpose.msra.mxu0 0.0
    %221 = vmatpush.xpose.msra.mxu0 0.0
    %222 = vmatpush.xpose.msra.mxu0 0.0
    %223 = vmatpush.xpose.msra.mxu0 0.0
    %224 = vmatpush.xpose.msra.mxu0 0.0
    %225 = vmatpush.xpose.msra.mxu0 0.0
    %226 = vmatpush.xpose.msra.mxu0 0.0
    %227 = vmatpush.xpose.msra.mxu0 0.0
    %228 = vmatpush.xpose.msra.mxu0 0.0
    %229 = vmatpush.xpose.msra.mxu0 %v163
    %230 = vmatmul.f32.gmra.mxu0 %v163
    %v231 = vpop.f32.mrf.mxu0
    %v232 = vadd.f32 0.0, %v231
    %233 = vdwg.mxu0
    %234 = vmatpush.xpose.msra.mxu0 0.0
    %235 = vmatpush.xpose.msra.mxu0 0.0
    %236 = vmatpush.xpose.msra.mxu0 0.0
    %237 = vmatpush.xpose.msra.mxu0 0.0
    %238 = vmatpush.xpose.msra.mxu0 0.0
    %239 = vmatpush.xpose.msra.mxu0 0.0
    %240 = vmatpush.xpose.msra.mxu0 0.0
    %241 = vmatpush.xpose.msra.mxu0 0.0
    %242 = vmatpush.xpose.msra.mxu0 0.0
    %243 = vmatpush.xpose.msra.mxu0 0.0
    %244 = vmatpush.xpose.msra.mxu0 0.0
    %245 = vmatpush.xpose.msra.mxu0 0.0
    %246 = vmatpush.xpose.msra.mxu0 0.0
    %247 = vmatpush.xpose.msra.mxu0 0.0
    %248 = vmatpush.xpose.msra.mxu0 0.0
    %249 = vmatpush.xpose.msra.mxu0 %v192
    %250 = vmatmul.f32.gmra.mxu0 %v192
    %v251 = vpop.f32.mrf.mxu0
    %v252 = vadd.f32 0.0, %v251
    %253 = vdwg.mxu0
    %254 = vmatpush.xpose.msra.mxu0 0.0
    %255 = vmatpush.xpose.msra.mxu0 0.0
    %256 = vmatpush.xpose.msra.mxu0 0.0
    %257 = vmatpush.xpose.msra.mxu0 0.0
    %258 = vmatpush.xpose.msra.mxu0 0.0
    %259 = vmatpush.xpose.msra.mxu0 0.0
    %260 = vmatpush.xpose.msra.mxu0 0.0
    %261 = vmatpush.xpose.msra.mxu0 0.0
    %262 = vmatpush.xpose.msra.mxu0 0.0
    %263 = vmatpush.xpose.msra.mxu0 0.0
    %264 = vmatpush.xpose.msra.mxu0 0.0
    %265 = vmatpush.xpose.msra.mxu0 0.0
    %266 = vmatpush.xpose.msra.mxu0 0.0
    %267 = vmatpush.xpose.msra.mxu0 0.0
    %268 = vmatpush.xpose.msra.mxu0 0.0
    %269 = vmatpush.xpose.msra.mxu0 %v192
    %270 = vmatmul.f32.gmra.mxu0 %v163
    %v271 = vpop.f32.mrf.mxu0
    %v272 = vadd.f32 0.0, %v271
    %273 = vdwg.mxu0
    %v275 = vsel %vm146, %v161, 0
    %277 = vmatpush.xpose.msra.mxu0 0.0
    %278 = vmatpush.xpose.msra.mxu0 0.0
    %279 = vmatpush.xpose.msra.mxu0 0.0
    %280 = vmatpush.xpose.msra.mxu0 0.0
    %281 = vmatpush.xpose.msra.mxu0 0.0
    %282 = vmatpush.xpose.msra.mxu0 0.0
    %283 = vmatpush.xpose.msra.mxu0 0.0
    %284 = vmatpush.xpose.msra.mxu0 0.0
    %285 = vmatpush.xpose.msra.mxu0 0.0
    %286 = vmatpush.xpose.msra.mxu0 0.0
    %287 = vmatpush.xpose.msra.mxu0 0.0
    %288 = vmatpush.xpose.msra.mxu0 0.0
    %289 = vmatpush.xpose.msra.mxu0 0.0
    %290 = vmatpush.xpose.msra.mxu0 0.0
    %291 = vmatpush.xpose.msra.mxu0 0.0
    %292 = vmatpush.xpose.msra.mxu0 %v275
    %293 = vmatmul.f32.gmra.mxu0 %v275
    %v294 = vpop.f32.mrf.mxu0
    %v295 = vadd.f32 0.0, %v294
    %296 = vdwg.mxu0
    %v297 = vsel %vm146, %v79, 0.0
    %298 = vadd.xlane.f32.xlu0 %v297
    %v299 = vpop.xlane.xlu0 %298
    %vm300 = vcmp.gt.f32.partialorder %v299, 1.0
    %v301 = vsel %vm300, 1.0, 0.0
    %vm302 = vcmask 7168
    %v304 = vsel %vm302, %v301, 0
    %306 = vmatpush.xpose.msra.mxu0 0.0
    %307 = vmatpush.xpose.msra.mxu0 0.0
    %308 = vmatpush.xpose.msra.mxu0 0.0
    %309 = vmatpush.xpose.msra.mxu0 0.0
    %310 = vmatpush.xpose.msra.mxu0 0.0
    %311 = vmatpush.xpose.msra.mxu0 0.0
    %312 = vmatpush.xpose.msra.mxu0 0.0
    %313 = vmatpush.xpose.msra.mxu0 0.0
    %314 = vmatpush.xpose.msra.mxu0 0.0
    %315 = vmatpush.xpose.msra.mxu0 0.0
    %316 = vmatpush.xpose.msra.mxu0 0.0
    %317 = vmatpush.xpose.msra.mxu0 0.0
    %318 = vmatpush.xpose.msra.mxu0 0.0
    %319 = vmatpush.xpose.msra.mxu0 0.0
    %320 = vmatpush.xpose.msra.mxu0 0.0
    %321 = vmatpush.xpose.msra.mxu0 %v304
    %322 = vmatmul.f32.gmra.mxu0 %v304
    %v323 = vpop.f32.mrf.mxu0
    %v324 = vadd.f32 0.0, %v323
    %325 = vdwg.mxu0
    %v326 = vsub.f32 1.0, %v189
    %v327 = vmul.f32 %v79, %v326
    %v328 = vsub.f32 1.0, %v212
    %v329 = vmul.f32 %v79, %v328
    %v330 = vsub.f32 1.0, %v79
    %v331 = vmax.f32 %v189, 0.0
    %v332 = vmax.f32 %v212, 0.0
    %v333 = vadd.f32 %v331, %v332
    %v334 = vmul.f32 %v330, %v333
    %v335 = vsel %vm146, %v327, 0.0
    %336 = vadd.xlane.f32.xlu0 %v335
    %v337 = vpop.xlane.xlu0 %336
    %v338 = vsel %vm146, %v329, 0.0
    %339 = vadd.xlane.f32.xlu0 %v338
    %v340 = vpop.xlane.xlu0 %339
    %v341 = vmul.f32 %v327, %v327
    %v342 = vmul.f32 %v329, %v329
    %v343 = vadd.f32 %v341, %v342
    %v344 = vsel %vm146, %v343, 0.0
    %345 = vadd.xlane.f32.xlu0 %v344
    %v346 = vpop.xlane.xlu0 %345
    %v347 = vsel %vm146, %v334, 0.0
    %348 = vadd.xlane.f32.xlu0 %v347
    %v349 = vpop.xlane.xlu0 %348
    %v350 = vmul.f32 %v337, %v337
    %v351 = vmul.f32 %v340, %v340
    %v352 = vadd.f32 %v350, %v351
    %v353 = vmul.f32 %v352, 0.0625
    %v354 = vsub.f32 %v346, %v353
    %v355 = vmul.f32 %v354, 0.06666667
    %vm356 = vcmp.gt.f32.partialorder %v295, 0.0
    %v357 = vsel %vm356, 1.0, 0.0
    %vm358 = vcmp.eq.f32.partialorder %v295, 0.0
    %v359 = vsel %vm358, %v324, 0.0
    %v360 = vsub.f32 %v295, %v232
    %v361 = vmax.f32 %v360, 0.0
    %v362 = vsub.f32 %v295, %v252
    %v363 = vmax.f32 %v362, 0.0
    %v364 = vadd.f32 %v361, %v363
    %v365 = vsub.f32 %v295, %v272
    %v366 = vmax.f32 %v365, 0.0
    %v367 = vadd.f32 %v364, %v366
    %v368 = vmax.f32 %v232, 0.0
    %v369 = vmax.f32 %v252, 0.0
    %v370 = vadd.f32 %v368, %v369
    %v371 = vmax.f32 %v272, 0.0
    %v372 = vadd.f32 %v370, %v371
    %v373 = vmul.f32 %v357, %v367
    %vm374 = vcmask 64512
    %v375 = vsel %vm374, %v373, 0.0
    %376 = vadd.xlane.f32.xlu0 %v375
    %v377 = vpop.xlane.xlu0 %376
    %v378 = vsel %vm374, %v357, 0.0
    %379 = vadd.xlane.f32.xlu0 %v378
    %v380 = vpop.xlane.xlu0 %379
    %v381 = vmul.f32 %v359, %v372
    %v382 = vsel %vm374, %v381, 0.0
    %383 = vadd.xlane.f32.xlu0 %v382
    %v384 = vpop.xlane.xlu0 %383
    %v385 = vsel %vm374, %v359, 0.0
    %386 = vadd.xlane.f32.xlu0 %v385
    %v387 = vpop.xlane.xlu0 %386
    %v388 = vadd.f32 %v337, %v340
    %v389 = vsub.f32 16.0, %v299
    %v390 = vsel %vm302, %v388, %v349
    %vm391 = vcmask 15360
    %v392 = vsel %vm391, %v390, %v355
    %vm393 = vcmask 23552
    %v394 = vsel %vm393, %v392, %v299
    %vm395 = vcmask 31744
    %v396 = vsel %vm395, %v394, %v389
    %vm397 = vcmask 39936
    %v398 = vsel %vm397, %v396, %v377
    %vm399 = vcmask 48128
    %v400 = vsel %vm399, %v398, %v380
    %vm401 = vcmask 56320
    %v402 = vsel %vm401, %v400, %v384
    %v403 = vsel %vm374, %v402, %v387
    %vm404 = vcmask 72704
    %v405 = vsel %vm404, %v403, 0.0
    %v406 = vrot.slane %v405, 4
    %v407 = vadd.f32 %v405, %v406
    %v408 = vrot.slane %v407, 2
    %v409 = vadd.f32 %v407, %v408
    %v410 = vrot.slane %v409, 1
    %v411 = vadd.f32 %v409, %v410
    %v412 = vmax.f32 %v411, 1e-30
    %v413 = vrcp.pop %v412
    %vm414 = vcmp.gt.f32.partialorder %v411, 0.0
    %416 = vrot.lane.b32.xlu0 %v413, 127
    %v417 = vpop.permute.xlu0 %416
    %v419 = vmul.f32 %v411, %v417
    %421 = vrot.lane.b32.xlu0 %v419, 1
    %v422 = vpop.permute.xlu0 %421
    %v424 = vsel %vm414, %v422, 0.0
    %425 = vrot.lane.b32.xlu0 %v413, 125
    %v426 = vpop.permute.xlu0 %425
    %v428 = vmul.f32 %v411, %v426
    %430 = vrot.lane.b32.xlu0 %v428, 127
    %v431 = vpop.permute.xlu0 %430
    %v433 = vadd.f32 %v428, %v431
    %v434 = vmul.f32 %v411, 0.125
    %436 = vrot.lane.b32.xlu0 %v434, 126
    %v437 = vpop.permute.xlu0 %436
    %v439 = vadd.f32 %v433, %v437
    %v440 = vmul.f32 %v411, 0.05
    %v441 = vmul.f32 %v440, %v417
    %443 = vrot.lane.b32.xlu0 %v441, 123
    %v444 = vpop.permute.xlu0 %443
    %v446 = vadd.f32 %v439, %v444
    %v447 = vmul.f32 %v424, 0.8
    %449 = vrot.lane.b32.xlu0 %v447, 120
    %v450 = vpop.permute.xlu0 %449
    %v452 = vadd.f32 %v446, %v450
    %s453 = vtos %v452
    %s454 = scalar_lea.smem [#allocation10], 0
    %455 = sst [smem:[%s454]] %s453
    // Predicated region
    $region34: #{tpu_custom_call.1} parent=1 // pred_check
      _
    $region35: #{tpu_custom_call.1} parent=1 // pred_check_branch
      %457 = sbr.rel (0) target = $region37
    $region36: #{tpu_custom_call.1} parent=1 // pred_region
      %459 = vsyncadd [#allocation4], 0
      %s461 = sshll.u32 %s4, 4
      %s462 = int_to_ptr.hbm [resolvable:$true] %s461
      %464 = dma.smem_to_hbm [#allocation10], 16, %s462, [#allocation4]
    $region37: #{tpu_custom_call.1} parent=1 // pred_fallthru
      _
    // Predicated region
    $region38: #{tpu_custom_call.1} parent=1 // pred_check
      _
    $region39: #{tpu_custom_call.1} parent=1 // pred_check_branch
      %466 = sbr.rel (0) target = $region41
    $region40: #{tpu_custom_call.1} parent=1 // pred_region
      %468 = dma.done [#allocation4], 16
    $region41: #{tpu_custom_call.1} parent=1 // pred_fallthru
      _
    %469 = sfence
    %470 = vsyncpa [#allocation3], 1
    %471 = vsyncpa [#allocation6], 1
    %472 = vsyncpa [#allocation9], 1
    %473 = vsyncpa [#allocation4], 1

</llo_original>
